<compile_context>
chip_gen: v6e
topology: v6e:2x2x1
jax: 0.10.0
libtpu: 0.0.40
codegen_flags: <defaults>
</compile_context>

<pallas_src>
import functools

import jax
import jax.numpy as jnp
from jax.experimental import pallas as pl
from jax.experimental.pallas import tpu as pltpu


# ----------------------------------------------------------------------------
# tiling / budget configuration
# ----------------------------------------------------------------------------
TM_PREF = 512            # im2col rows (pixels) per tile
TN_PREF = 512            # output channels per tile
TK_PREF = 2048           # reduction tile when K is split over the grid
K_SINGLE_MAX = 4608      # up to this total K use a single K step (no acc scratch)


def _default_vmem_limit():
    # Generation-aware VMEM budget: ~3/4 of physical, capped at 100 MiB,
    # floored at 48 MiB (safe on v5e / v6e / v7x).
    cap = 0
    try:
        info = pltpu.get_tpu_info()
        cap = int(getattr(info, "vmem_capacity_bytes", 0) or 0)
    except Exception:
        cap = 0
    if cap <= 0:
        cap = 64 * 1024 * 1024
    return max(48 * 1024 * 1024, min(cap * 3 // 4, 100 * 1024 * 1024))


VMEM_LIMIT = _default_vmem_limit()


def _round_up(x, m):
    return ((x + m - 1) // m) * m


def _pick_tile(total, pref, mult):
    """Largest multiple of `mult` that divides `total` and is <= pref (else full)."""
    if total <= pref:
        return total
    t = max((pref // mult) * mult, mult)
    while t > mult and total % t != 0:
        t -= mult
    if total % t != 0:
        return total            # fall back to a single full-extent block
    return t


# ----------------------------------------------------------------------------
# fused conv-as-matmul kernels
#   out = relu(sum_s A_s @ W_s * scale + shift) [+ residual]    (f32 math, bf16 I/O)
# ----------------------------------------------------------------------------
def _conv_kernel_single_k(S, relu, has_res):
    def kernel(*refs):
        a_refs = refs[:S]
        w_ref, scale_ref, shift_ref = refs[S], refs[S + 1], refs[S + 2]
        r_ref = refs[S + 3] if has_res else None
        o_ref = refs[-1]

        acc = jnp.dot(a_refs[0][...], w_ref[0],
                      preferred_element_type=jnp.float32)
        for s in range(1, S):
            acc = acc + jnp.dot(a_refs[s][...], w_ref[s],
                                preferred_element_type=jnp.float32)
        y = acc * scale_ref[...] + shift_ref[...]
        if relu:
            y = jnp.maximum(y, 0.0)
        if has_res:
            y = y + r_ref[...].astype(jnp.float32)
        o_ref[...] = y.astype(o_ref.dtype)

    return kernel


def _conv_kernel_multi_k(S, relu, has_res):
    def kernel(*refs):
        a_refs = refs[:S]
        w_ref, scale_ref, shift_ref = refs[S], refs[S + 1], refs[S + 2]
        r_ref = refs[S + 3] if has_res else None
        o_ref = refs[-2]
        acc_ref = refs[-1]
        kk = pl.program_id(2)

        @pl.when(kk == 0)
        def _():
            acc_ref[...] = jnp.zeros_like(acc_ref)

        for s in range(S):
            acc_ref[...] += jnp.dot(a_refs[s][...], w_ref[s],
                                    preferred_element_type=jnp.float32)

        @pl.when(kk == pl.num_programs(2) - 1)
        def _():
            y = acc_ref[...] * scale_ref[...] + shift_ref[...]
            if relu:
                y = jnp.maximum(y, 0.0)
            if has_res:
                y = y + r_ref[...].astype(jnp.float32)
            o_ref[...] = y.astype(o_ref.dtype)

    return kernel


@functools.lru_cache(maxsize=None)
def _build_conv_call(Mp, tm, Kseg, Np, S, relu, has_res):
    tn = _pick_tile(Np, TN_PREF, 128)
    single_k = (S * Kseg <= K_SINGLE_MAX) or (Kseg % 128 != 0)

    if single_k:
        grid = (Mp // tm, Np // tn)
        a_specs = [pl.BlockSpec((tm, Kseg), lambda m, n: (m, 0)) for _ in range(S)]
        w_spec = pl.BlockSpec((S, Kseg, tn), lambda m, n: (0, 0, n))
        v_spec = pl.BlockSpec((1, tn), lambda m, n: (0, n))
        mn_spec = pl.BlockSpec((tm, tn), lambda m, n: (m, n))
        scratch = []
        kernel = _conv_kernel_single_k(S, relu, has_res)
        semantics = ("parallel", "parallel")
    else:
        tk = _pick_tile(Kseg, TK_PREF, 128)
        grid = (Mp // tm, Np // tn, Kseg // tk)
        a_specs = [pl.BlockSpec((tm, tk), lambda m, n, k: (m, k)) for _ in range(S)]
        w_spec = pl.BlockSpec((S, tk, tn), lambda m, n, k: (0, k, n))
        v_spec = pl.BlockSpec((1, tn), lambda m, n, k: (0, n))
        mn_spec = pl.BlockSpec((tm, tn), lambda m, n, k: (m, n))
        scratch = [pltpu.VMEM((tm, tn), jnp.float32)]
        kernel = _conv_kernel_multi_k(S, relu, has_res)
        semantics = ("parallel", "parallel", "arbitrary")

    in_specs = a_specs + [w_spec, v_spec, v_spec]
    if has_res:
        in_specs.append(mn_spec)

    bytes_accessed = int(
        S * Mp * Kseg * 2 * max(1, Np // tn)        # A, re-streamed per N tile
        + S * Kseg * Np * 2 * max(1, Mp // tm)      # W, re-streamed per M tile
        + Mp * Np * 2 * (2 if has_res else 1)       # output (+ residual), bf16
        + Np * 8)
    cost = pl.CostEstimate(flops=int(2 * S * Mp * Kseg * Np),
                           transcendentals=0,
                           bytes_accessed=bytes_accessed)

    return pl.pallas_call(
        kernel,
        out_shape=jax.ShapeDtypeStruct((Mp, Np), jnp.bfloat16),
        grid_spec=pltpu.PrefetchScalarGridSpec(
            num_scalar_prefetch=0,
            grid=grid,
            in_specs=in_specs,
            out_specs=mn_spec,
            scratch_shapes=scratch),
        compiler_params=pltpu.CompilerParams(
            dimension_semantics=semantics,
            vmem_limit_bytes=VMEM_LIMIT),
        cost_estimate=cost,
    )


def fused_conv(a_list, w, scale, shift, *, relu, residual=None):
    """a_list: S matrices (M, K_s) (equal K_s); w: (S, Kseg, Nout) bf16."""
    S, Kseg, Np = w.shape
    M = a_list[0].shape[0]
    tm = min(TM_PREF, _round_up(M, 16))     # bf16 sublane packing -> 16-row multiple
    Mp = _round_up(M, tm)

    prepped = []
    for a in a_list:
        a = a.astype(jnp.bfloat16)
        pad_m = Mp - M
        pad_k = Kseg - a.shape[1]
        if pad_m or pad_k:
            a = jnp.pad(a, ((0, pad_m), (0, pad_k)))
        prepped.append(a)

    has_res = residual is not None
    args = prepped + [w, scale, shift]
    if has_res:
        r = residual.astype(jnp.bfloat16)
        if Mp != M:
            r = jnp.pad(r, ((0, Mp - M), (0, 0)))
        args.append(r)

    y = _build_conv_call(Mp, tm, Kseg, Np, S, bool(relu), has_res)(*args)
    return y if Mp == M else y[:M]


# ----------------------------------------------------------------------------
# conv wrappers (im2col + fused kernel)
# ----------------------------------------------------------------------------
def _im2col_3x3(x):
    """NHWC bf16 -> (N*H*W, 9*C) patches, taps ordered (di, dj) with C contiguous."""
    N, H, W, C = x.shape
    xp = jnp.pad(x, ((0, 0), (1, 1), (1, 1), (0, 0)))
    cols = [xp[:, i:i + H, j:j + W, :] for i in range(3) for j in range(3)]
    return jnp.concatenate(cols, axis=-1).reshape(N * H * W, 9 * C)


def apply_conv(xs, p, *, relu, residual=None):
    """xs: list of NHWC segments (len > 1 only for 1x1 convs over fused concats)."""
    N, H, W, _ = xs[0].shape
    M = N * H * W
    n_out = p['n_out']
    if p['ksize'] == 3:
        assert len(xs) == 1
        # TODO(synk): the 3x3 im2col patch matrix is still materialized in HBM (bf16);
        # folding the patch gather into the kernel's BlockSpecs/DMA (row blocks + halo)
        # would cut A-side HBM traffic by a further ~3-9x on the big-spatial stages.
        a_list = [_im2col_3x3(xs[0].astype(jnp.bfloat16))]
    else:
        a_list = [x.astype(jnp.bfloat16).reshape(M, x.shape[-1]) for x in xs]
    r = None if residual is None else residual.reshape(M, n_out)
    y = fused_conv(a_list, p['w'], p['scale'], p['shift'], relu=relu, residual=r)
    return y.reshape(N, H, W, n_out)


# ----------------------------------------------------------------------------
# 2x2 max-pool (stride 2): single-pass kernel, no strided JAX views
# ----------------------------------------------------------------------------
def _maxpool_kernel(a_ref, b_ref, o_ref):
    a = a_ref[0, :, 0, :, :]                 # (th, Wo, 2*C)  rows with h = 2*r
    b = b_ref[0, :, 0, :, :]                 # (th, Wo, 2*C)  rows with h = 2*r + 1
    r = jnp.maximum(a, b)
    C = o_ref.shape[-1]
    o_ref[0] = jnp.maximum(r[..., :C], r[..., C:])


@functools.lru_cache(maxsize=None)
def _build_maxpool_call(N, Ho, Wo, C, th):
    a_spec = pl.BlockSpec((1, th, 1, Wo, 2 * C), lambda n, r: (n, r, 0, 0, 0))
    b_spec = pl.BlockSpec((1, th, 1, Wo, 2 * C), lambda n, r: (n, r, 1, 0, 0))
    o_spec = pl.BlockSpec((1, th, Wo, C), lambda n, r: (n, r, 0, 0))
    return pl.pallas_call(
        _maxpool_kernel,
        out_shape=jax.ShapeDtypeStruct((N, Ho, Wo, C), jnp.bfloat16),
        grid_spec=pltpu.PrefetchScalarGridSpec(
            num_scalar_prefetch=0,
            grid=(N, Ho // th),
            in_specs=[a_spec, b_spec],
            out_specs=o_spec),
        compiler_params=pltpu.CompilerParams(
            dimension_semantics=("parallel", "parallel"),
            vmem_limit_bytes=VMEM_LIMIT),
    )


def maxpool2x2(x):
    N, H, W, C = x.shape
    Ho, Wo = H // 2, W // 2
    # Free (row-major-compatible) reshape: the 2x2 window phases become a size-2
    # leading dim (row phase) + a lane-dim split (column phase) that the two
    # BlockSpecs / kernel consume directly -> one HBM read, one HBM write.
    xr = x.reshape(N, Ho, 2, Wo, 2 * C)
    row_bytes = max(1, Wo * 2 * C * 2)
    th = max(1, min(Ho, (2 * 1024 * 1024) // row_bytes))
    while Ho % th:
        th -= 1
    return _build_maxpool_call(N, Ho, Wo, C, th)(xr, xr)


# ----------------------------------------------------------------------------
# nearest-neighbor 2x upsample (glue)
# ----------------------------------------------------------------------------
def upsample2x(x):
    # TODO(synk): still materializes the 4x tensor in HBM; folding
    # src_row = dst_row // 2 into the following Up-conv's patch gather would
    # remove this round trip.
    N, H, W, C = x.shape
    y = jnp.broadcast_to(x[:, :, None, :, None, :], (N, H, 2, W, 2, C))
    return y.reshape(N, 2 * H, 2 * W, C)


# ----------------------------------------------------------------------------
# R2U-Net building blocks
# ----------------------------------------------------------------------------
def recurrent_block(x, p, t, final_residual=None):
    # PyTorch: x1 = conv(x); for i in range(t): x1 = conv(x + x1)
    # (conv = Conv3x3 -> BN -> ReLU).  The per-step "x +" adds and the trailing
    # RRCNN residual are fused into the conv epilogues (no JAX elementwise passes).
    assert t >= 1
    s = apply_conv([x], p, relu=True, residual=x)            # x + conv(x)
    for _ in range(t - 1):
        s = apply_conv([s], p, relu=True, residual=x)        # x + conv(prev)
    return apply_conv([s], p, relu=True, residual=final_residual)


def rrcnn_block(xs, p, t):
    # Conv_1x1 (plain conv + bias, no BN/ReLU).  Decoder levels pass the skip and
    # upsampled tensors as separate K segments, so the channel concat is never
    # materialized in HBM.
    x = apply_conv(list(xs), p['conv1x1'], relu=False)
    x1 = recurrent_block(x, p['rb1'], t)
    return recurrent_block(x1, p['rb2'], t, final_residual=x)    # x + RCNN(x)


def up_conv_block(x, p):
    return apply_conv([upsample2x(x)], p, relu=True)


# ----------------------------------------------------------------------------
# deterministic parameter init (synthetic; matches module shapes)
# Weights stored as (S, Kseg, cout) bf16; BN folded into (scale, shift) f32.
# ----------------------------------------------------------------------------
def init_conv(key, ksize, cin_list, cout, bn):
    S = len(cin_list)
    cseg = cin_list[0]
    assert all(c == cseg for c in cin_list)
    kdim_total = ksize * ksize * sum(cin_list)
    kseg_real = ksize * ksize * cseg
    kseg = _round_up(kseg_real, 8)                   # tiny K (img_ch=3) padded to 8
    k1, k2, k3, k4, k5 = jax.random.split(key, 5)
    w = jax.random.normal(k1, (S, kseg_real, cout), jnp.float32) * jnp.sqrt(
        2.0 / kdim_total)
    b = 0.01 * jax.random.normal(k2, (cout,), jnp.float32)
    if bn:
        gamma = 1.0 + 0.1 * jax.random.normal(k3, (cout,), jnp.float32)
        beta = 0.05 * jax.random.normal(k4, (cout,), jnp.float32)
        mean = 0.05 * jax.random.normal(k5, (cout,), jnp.float32)
        var = jnp.ones((cout,), jnp.float32)
        scale = gamma / jnp.sqrt(var + 1e-5)
        shift = (b - mean) * scale + beta
    else:
        scale = jnp.ones((cout,), jnp.float32)
        shift = b
    w_p = jnp.zeros((S, kseg, cout), jnp.bfloat16).at[:, :kseg_real, :].set(
        w.astype(jnp.bfloat16))
    return {'ksize': ksize, 'w': w_p,
            'scale': scale.reshape(1, cout), 'shift': shift.reshape(1, cout),
            'n_out': cout}


def init_rrcnn(key, cin_list, cout):
    k = jax.random.split(key, 3)
    return {'conv1x1': init_conv(k[0], 1, cin_list, cout, bn=False),
            'rb1': init_conv(k[1], 3, [cout], cout, bn=True),
            'rb2': init_conv(k[2], 3, [cout], cout, bn=True)}


def init_r2unet(key, img_ch=3):
    ks = jax.random.split(key, 13)
    c = 64
    return {
        'RRCNN1': init_rrcnn(ks[0], [img_ch], c),
        'RRCNN2': init_rrcnn(ks[1], [c], 2 * c),
        'RRCNN3': init_rrcnn(ks[2], [2 * c], 4 * c),
        'RRCNN4': init_rrcnn(ks[3], [4 * c], 8 * c),
        'RRCNN5': init_rrcnn(ks[4], [8 * c], 16 * c),
        'Up5': init_conv(ks[5], 3, [16 * c], 8 * c, bn=True),
        'Up_RRCNN5': init_rrcnn(ks[6], [8 * c, 8 * c], 8 * c),
        'Up4': init_conv(ks[7], 3, [8 * c], 4 * c, bn=True),
        'Up_RRCNN4': init_rrcnn(ks[8], [4 * c, 4 * c], 4 * c),
        'Up3': init_conv(ks[9], 3, [4 * c], 2 * c, bn=True),
        'Up_RRCNN3': init_rrcnn(ks[10], [2 * c, 2 * c], 2 * c),
        'Up2': init_conv(ks[11], 3, [2 * c], c, bn=True),
        'Up_RRCNN2': init_rrcnn(ks[12], [c, c], c),
    }


# ----------------------------------------------------------------------------
# full forward (NCHW in / NCHW out)
# ----------------------------------------------------------------------------
def r2u_net_forward(x_nchw, p, t=1):
    x = jnp.transpose(x_nchw, (0, 2, 3, 1)).astype(jnp.bfloat16)   # -> NHWC bf16

    x1 = rrcnn_block((x,), p['RRCNN1'], t)
    x2 = rrcnn_block((maxpool2x2(x1),), p['RRCNN2'], t)
    x3 = rrcnn_block((maxpool2x2(x2),), p['RRCNN3'], t)
    x4 = rrcnn_block((maxpool2x2(x3),), p['RRCNN4'], t)
    x5 = rrcnn_block((maxpool2x2(x4),), p['RRCNN5'], t)

    d5 = up_conv_block(x5, p['Up5'])
    d5 = rrcnn_block((x4, d5), p['Up_RRCNN5'], t)    # concat fused as 2 K-segments
    d4 = up_conv_block(d5, p['Up4'])
    d4 = rrcnn_block((x3, d4), p['Up_RRCNN4'], t)
    d3 = up_conv_block(d4, p['Up3'])
    d3 = rrcnn_block((x2, d3), p['Up_RRCNN3'], t)
    d2 = up_conv_block(d3, p['Up2'])
    d2 = rrcnn_block((x1, d2), p['Up_RRCNN2'], t)

    return jnp.transpose(d2, (0, 3, 1, 2)).astype(jnp.float32)     # -> NCHW


if __name__ == "__main__":
    key = jax.random.PRNGKey(0)
    kx, kp = jax.random.split(key)

    # small but module-consistent: batch=1, img_ch=3, 16x16 spatial
    # (5 resolution levels: 16 -> 8 -> 4 -> 2 -> 1)
    x = jax.random.normal(kx, (1, 3, 16, 16), jnp.float32)
    params = init_r2unet(kp, img_ch=3)

    out = r2u_net_forward(x, params, t=1)
    out = jax.block_until_ready(out)

    assert out.shape == (1, 64, 16, 16), out.shape
    assert bool(jnp.all(jnp.isfinite(out)))
    print("KERNEL_OK")
</pallas_src>

<mosaic_0001>
module attributes {stable_mosaic.version = 11 : i64} {
  func.func @kernel(%arg0: i32, %arg1: i32, %arg2: memref<256x8xbf16, #tpu.memory_space<vmem>>, %arg3: memref<1x8x64xbf16, #tpu.memory_space<vmem>>, %arg4: memref<1x64xf32, #tpu.memory_space<vmem>>, %arg5: memref<1x64xf32, #tpu.memory_space<vmem>>, %arg6: memref<256x64xbf16, #tpu.memory_space<vmem>>) attributes {dimension_semantics = [#tpu.dimension_semantics<parallel>, #tpu.dimension_semantics<parallel>], iteration_bounds = array<i64: 1, 1>, scalar_prefetch = 0 : i64, scratch_operands = 0 : i64, tpu.core_type = #tpu.core_type<tc>, window_params = [{transform_indices = @transform_0, window_bounds = array<i64: 256, 8>}, {transform_indices = @transform_1, window_bounds = array<i64: 1, 8, 64>}, {transform_indices = @transform_2, window_bounds = array<i64: 1, 64>}, {transform_indices = @transform_3, window_bounds = array<i64: 1, 64>}, {transform_indices = @transform_4, window_bounds = array<i64: 256, 64>}]} {
    %c0 = arith.constant 0 : index
    %c0_0 = arith.constant 0 : index
    %0 = vector.load %arg2[%c0, %c0_0] : memref<256x8xbf16, #tpu.memory_space<vmem>>, vector<256x8xbf16>
    %c0_1 = arith.constant 0 : index
    %c0_2 = arith.constant 0 : index
    %c0_3 = arith.constant 0 : index
    %1 = vector.load %arg3[%c0_1, %c0_2, %c0_3] : memref<1x8x64xbf16, #tpu.memory_space<vmem>>, vector<1x8x64xbf16>
    %2 = vector.shape_cast %1 : vector<1x8x64xbf16> to vector<8x64xbf16>
    %cst = arith.constant dense<0.000000e+00> : vector<256x64xf32>
    %3 = tpu.matmul %0, %2, %cst {dimension_numbers = #tpu.dot_dimension_numbers<[1], [0], [0], [1], [0, 0, 1, 1], [], []>} : vector<256x8xbf16>, vector<8x64xbf16>, vector<256x64xf32> -> vector<256x64xf32>
    %c0_4 = arith.constant 0 : index
    %c0_5 = arith.constant 0 : index
    %4 = vector.load %arg4[%c0_4, %c0_5] : memref<1x64xf32, #tpu.memory_space<vmem>>, vector<1x64xf32>
    %5 = vector.broadcast %4 : vector<1x64xf32> to vector<256x64xf32>
    %6 = arith.mulf %3, %5 : vector<256x64xf32>
    %c0_6 = arith.constant 0 : index
    %c0_7 = arith.constant 0 : index
    %7 = vector.load %arg5[%c0_6, %c0_7] : memref<1x64xf32, #tpu.memory_space<vmem>>, vector<1x64xf32>
    %8 = vector.broadcast %7 : vector<1x64xf32> to vector<256x64xf32>
    %9 = arith.addf %6, %8 : vector<256x64xf32>
    %10 = arith.truncf %9 : vector<256x64xf32> to vector<256x64xbf16>
    %c0_8 = arith.constant 0 : index
    %c0_9 = arith.constant 0 : index
    %11 = vector.load %arg6[%c0_8, %c0_9] : memref<256x64xbf16, #tpu.memory_space<vmem>>, vector<256x64xbf16>
    tpu.vector_store %arg6[%c0_8, %c0_9], %10 {strides = array<i32>} : memref<256x64xbf16, #tpu.memory_space<vmem>>, vector<256x64xbf16>,
    return
  }
  func.func @transform_0(%arg0: i32, %arg1: i32) -> (i32, i32) {
    %c0_i32 = arith.constant 0 : i32
    %c0_i32_0 = arith.constant 0 : i32
    return %arg0, %c0_i32 : i32, i32
  }
  func.func @transform_1(%arg0: i32, %arg1: i32) -> (i32, i32, i32) {
    %c0_i32 = arith.constant 0 : i32
    %c0_i32_0 = arith.constant 0 : i32
    %c0_i32_1 = arith.constant 0 : i32
    return %c0_i32, %c0_i32_0, %arg1 : i32, i32, i32
  }
  func.func @transform_2(%arg0: i32, %arg1: i32) -> (i32, i32) {
    %c0_i32 = arith.constant 0 : i32
    %c0_i32_0 = arith.constant 0 : i32
    return %c0_i32, %arg1 : i32, i32
  }
  func.func @transform_3(%arg0: i32, %arg1: i32) -> (i32, i32) {
    %c0_i32 = arith.constant 0 : i32
    %c0_i32_0 = arith.constant 0 : i32
    return %c0_i32, %arg1 : i32, i32
  }
  func.func @transform_4(%arg0: i32, %arg1: i32) -> (i32, i32) {
    %c0_i32 = arith.constant 0 : i32
    return %arg0, %arg1 : i32, i32
  }
}

</mosaic_0001>

<llo_original>
// kernel: tpu_custom_call.1
$region0: #{tpu_custom_call.1}
  #allocation0 [shape = 'u32[]', space=smem, size = 0x4, offset = 0x4, fixed_abs, tag = 'smem constant byte address 0x4 - core index']
  #allocation1 [shape = 'u32[144,128]{1,0:T(1,128)}', space=vmem, size = 0x12000, scoped, tag = 'internal scratch']
  %s0 = inlined_call_operand.vmem [shape: bf16[256,8], index: 0, kind: input, shape index: {}]
  %s1 = inlined_call_operand.vmem [shape: bf16[1,8,64], index: 1, kind: input, shape index: {}]
  %s2 = inlined_call_operand.vmem [shape: f32[1,64], index: 2, kind: input, shape index: {}]
  %s3 = inlined_call_operand.vmem [shape: f32[1,64], index: 3, kind: input, shape index: {}]
  %s4 = inlined_call_operand.vmem [shape: bf16[256,64], index: 4, kind: output, shape index: {}]
  %s5 = sld [smem:[#allocation0]]
  $region26: #{tpu_custom_call.1} parent=0
    _
  %s7 = ssub.s32 1, %s5
  %s8 = scalar_select 0, %s7, %s5
  // Predicated region
  $region2: #{tpu_custom_call.1} parent=0 // pred_check
    _
  $region3: #{tpu_custom_call.1} parent=0 // pred_check_branch
    %10 = sbr.rel (0) target = $region5
  $region4: #{tpu_custom_call.1} parent=0 // pred_region
    _
  $region5: #{tpu_custom_call.1} parent=0 // pred_fallthru
    _
  // Predicated region
  $region6: #{tpu_custom_call.1} parent=0 // pred_check
    _
  $region7: #{tpu_custom_call.1} parent=0 // pred_check_branch
    %12 = sbr.rel (0) target = $region9
  $region8: #{tpu_custom_call.1} parent=0 // pred_region
    _
  $region9: #{tpu_custom_call.1} parent=0 // pred_fallthru
    _
  // Predicated region
  $region10: #{tpu_custom_call.1} parent=0 // pred_check
    _
  $region11: #{tpu_custom_call.1} parent=0 // pred_check_branch
    %14 = sbr.rel (0) target = $region13
  $region12: #{tpu_custom_call.1} parent=0 // pred_region
    _
  $region13: #{tpu_custom_call.1} parent=0 // pred_fallthru
    _
  // Predicated region
  $region14: #{tpu_custom_call.1} parent=0 // pred_check
    _
  $region15: #{tpu_custom_call.1} parent=0 // pred_check_branch
    %16 = sbr.rel (0) target = $region17
  $region16: #{tpu_custom_call.1} parent=0 // pred_region
    _
  $region17: #{tpu_custom_call.1} parent=0 // pred_fallthru
    _
  %v18 = vld [vmem:[%s0] sm:$0xf]
  %v19 = vld [vmem:[%s0 + $0x4] sm:$0xf]
  %v20 = vld [vmem:[%s0 + $0x8] sm:$0xf]
  %v21 = vld [vmem:[%s0 + $0xc] sm:$0xf]
  %v22 = vld [vmem:[%s0 + $0x10] sm:$0xf]
  %v23 = vld [vmem:[%s0 + $0x14] sm:$0xf]
  %v24 = vld [vmem:[%s0 + $0x18] sm:$0xf]
  %v25 = vld [vmem:[%s0 + $0x1c] sm:$0xf]
  %v26 = vld [vmem:[%s0 + $0x20] sm:$0xf]
  %v27 = vld [vmem:[%s0 + $0x24] sm:$0xf]
  %v28 = vld [vmem:[%s0 + $0x28] sm:$0xf]
  %v29 = vld [vmem:[%s0 + $0x2c] sm:$0xf]
  %v30 = vld [vmem:[%s0 + $0x30] sm:$0xf]
  %v31 = vld [vmem:[%s0 + $0x34] sm:$0xf]
  %v32 = vld [vmem:[%s0 + $0x38] sm:$0xf]
  %v33 = vld [vmem:[%s0 + $0x3c] sm:$0xf]
  %v34 = vld [vmem:[%s0 + $0x40] sm:$0xf]
  %v35 = vld [vmem:[%s0 + $0x44] sm:$0xf]
  %v36 = vld [vmem:[%s0 + $0x48] sm:$0xf]
  %v37 = vld [vmem:[%s0 + $0x4c] sm:$0xf]
  %v38 = vld [vmem:[%s0 + $0x50] sm:$0xf]
  %v39 = vld [vmem:[%s0 + $0x54] sm:$0xf]
  %v40 = vld [vmem:[%s0 + $0x58] sm:$0xf]
  %v41 = vld [vmem:[%s0 + $0x5c] sm:$0xf]
  %v42 = vld [vmem:[%s0 + $0x60] sm:$0xf]
  %v43 = vld [vmem:[%s0 + $0x64] sm:$0xf]
  %v44 = vld [vmem:[%s0 + $0x68] sm:$0xf]
  %v45 = vld [vmem:[%s0 + $0x6c] sm:$0xf]
  %v46 = vld [vmem:[%s0 + $0x70] sm:$0xf]
  %v47 = vld [vmem:[%s0 + $0x74] sm:$0xf]
  %v48 = vld [vmem:[%s0 + $0x78] sm:$0xf]
  %v49 = vld [vmem:[%s0 + $0x7c] sm:$0xf]
  %v50 = vld [vmem:[%s1] sm:$0xf]
  %v83 = vunpack.c.l.b16 %v18
  %v84 = vunpack.c.l.b16 %v19
  %v85 = vunpack.c.l.b16 %v20
  %v86 = vunpack.c.l.b16 %v21
  %v87 = vunpack.c.l.b16 %v22
  %v88 = vunpack.c.l.b16 %v23
  %v89 = vunpack.c.l.b16 %v24
  %v90 = vunpack.c.l.b16 %v25
  %v91 = vunpack.c.l.b16 %v26
  %v92 = vunpack.c.l.b16 %v27
  %v93 = vunpack.c.l.b16 %v28
  %v94 = vunpack.c.l.b16 %v29
  %v95 = vunpack.c.l.b16 %v30
  %v96 = vunpack.c.l.b16 %v31
  %v97 = vunpack.c.l.b16 %v32
  %v98 = vunpack.c.l.b16 %v33
  %v99 = vunpack.c.l.b16 %v34
  %v100 = vunpack.c.l.b16 %v35
  %v101 = vunpack.c.l.b16 %v36
  %v102 = vunpack.c.l.b16 %v37
  %v103 = vunpack.c.l.b16 %v38
  %v104 = vunpack.c.l.b16 %v39
  %v105 = vunpack.c.l.b16 %v40
  %v106 = vunpack.c.l.b16 %v41
  %v107 = vunpack.c.l.b16 %v42
  %v108 = vunpack.c.l.b16 %v43
  %v109 = vunpack.c.l.b16 %v44
  %v110 = vunpack.c.l.b16 %v45
  %v111 = vunpack.c.l.b16 %v46
  %v112 = vunpack.c.l.b16 %v47
  %v113 = vunpack.c.l.b16 %v48
  %v114 = vunpack.c.l.b16 %v49
  %v115 = vpack.c.b16 %v84, %v83
  %v116 = vpack.c.b16 %v86, %v85
  %v117 = vpack.c.b16 %v88, %v87
  %v118 = vpack.c.b16 %v90, %v89
  %v119 = vpack.c.b16 %v92, %v91
  %v120 = vpack.c.b16 %v94, %v93
  %v121 = vpack.c.b16 %v96, %v95
  %v122 = vpack.c.b16 %v98, %v97
  %v123 = vpack.c.b16 %v100, %v99
  %v124 = vpack.c.b16 %v102, %v101
  %v125 = vpack.c.b16 %v104, %v103
  %v126 = vpack.c.b16 %v106, %v105
  %v127 = vpack.c.b16 %v108, %v107
  %v128 = vpack.c.b16 %v110, %v109
  %v129 = vpack.c.b16 %v112, %v111
  %v130 = vpack.c.b16 %v114, %v113
  %vm131 = vcmask 64512
  %v133 = vsel %vm131, %v115, 0
  %v136 = vsel %vm131, %v116, 0
  %v139 = vsel %vm131, %v117, 0
  %v142 = vsel %vm131, %v118, 0
  %v145 = vsel %vm131, %v119, 0
  %v148 = vsel %vm131, %v120, 0
  %v151 = vsel %vm131, %v121, 0
  %v154 = vsel %vm131, %v122, 0
  %v157 = vsel %vm131, %v123, 0
  %v160 = vsel %vm131, %v124, 0
  %v163 = vsel %vm131, %v125, 0
  %v166 = vsel %vm131, %v126, 0
  %v169 = vsel %vm131, %v127, 0
  %v172 = vsel %vm131, %v128, 0
  %v175 = vsel %vm131, %v129, 0
  %v178 = vsel %vm131, %v130, 0
  %vm180 = vcmask 1043456
  %v182 = vsel %vm180, %v50, 0
  %184 = vmatprep.subr.bf16.mxu0 0
  %185 = vmatpush1.bf16.msra.mxu0 0
  %186 = vmatprep.subr.bf16.mxu0 0
  %187 = vmatpush1.bf16.msra.mxu0 0
  %188 = vmatprep.subr.bf16.mxu0 0
  %189 = vmatpush1.bf16.msra.mxu0 0
  %190 = vmatprep.subr.bf16.mxu0 0
  %191 = vmatpush1.bf16.msra.mxu0 0
  %192 = vmatprep.subr.bf16.mxu0 0
  %193 = vmatpush1.bf16.msra.mxu0 0
  %194 = vmatprep.subr.bf16.mxu0 0
  %195 = vmatpush1.bf16.msra.mxu0 0
  %196 = vmatprep.subr.bf16.mxu0 0
  %197 = vmatpush1.bf16.msra.mxu0 0
  %198 = vmatprep.subr.bf16.mxu0 0
  %199 = vmatpush1.bf16.msra.mxu0 %v182
  %200 = vmatprep.subr.bf16.mxu0 0
  %201 = vmatpush2.bf16.msra.mxu0 0
  %202 = vmatprep.subr.bf16.mxu0 0
  %203 = vmatpush2.bf16.msra.mxu0 0
  %204 = vmatprep.subr.bf16.mxu0 0
  %205 = vmatpush2.bf16.msra.mxu0 0
  %206 = vmatprep.subr.bf16.mxu0 0
  %207 = vmatpush2.bf16.msra.mxu0 0
  %208 = vmatprep.subr.bf16.mxu0 0
  %209 = vmatpush2.bf16.msra.mxu0 0
  %210 = vmatprep.subr.bf16.mxu0 0
  %211 = vmatpush2.bf16.msra.mxu0 0
  %212 = vmatprep.subr.bf16.mxu0 0
  %213 = vmatpush2.bf16.msra.mxu0 0
  %214 = vmatprep.subr.bf16.mxu0 0
  %215 = vmatpush2.bf16.msra.mxu0 0
  %216 = vmatprep.mubr.bf16.mxu0 0
  %217 = vmatmul.mubr.bf16.gmra.mxu0 %v133
  %v218 = vpop.f32.mrf.mxu0
  %v219 = vadd.f32 0.0, %v218
  %v220 = vpop.f32.mrf.mxu0
  %v221 = vpop.f32.mrf.mxu0
  %v222 = vadd.f32 0.0, %v221
  %v223 = vpop.f32.mrf.mxu0
  %224 = vmatprep.mubr.bf16.mxu0 0
  %225 = vmatmul.mubr.bf16.gmra.mxu0 %v136
  %v226 = vpop.f32.mrf.mxu0
  %v227 = vadd.f32 0.0, %v226
  %v228 = vpop.f32.mrf.mxu0
  %v229 = vpop.f32.mrf.mxu0
  %v230 = vadd.f32 0.0, %v229
  %v231 = vpop.f32.mrf.mxu0
  %232 = vmatprep.mubr.bf16.mxu0 0
  %233 = vmatmul.mubr.bf16.gmra.mxu0 %v139
  %v234 = vpop.f32.mrf.mxu0
  %v235 = vadd.f32 0.0, %v234
  %v236 = vpop.f32.mrf.mxu0
  %v237 = vpop.f32.mrf.mxu0
  %v238 = vadd.f32 0.0, %v237
  %v239 = vpop.f32.mrf.mxu0
  %240 = vmatprep.mubr.bf16.mxu0 0
  %241 = vmatmul.mubr.bf16.gmra.mxu0 %v142
  %v242 = vpop.f32.mrf.mxu0
  %v243 = vadd.f32 0.0, %v242
  %v244 = vpop.f32.mrf.mxu0
  %v245 = vpop.f32.mrf.mxu0
  %v246 = vadd.f32 0.0, %v245
  %v247 = vpop.f32.mrf.mxu0
  %248 = vmatprep.mubr.bf16.mxu0 0
  %249 = vmatmul.mubr.bf16.gmra.mxu0 %v145
  %v250 = vpop.f32.mrf.mxu0
  %v251 = vadd.f32 0.0, %v250
  %v252 = vpop.f32.mrf.mxu0
  %v253 = vpop.f32.mrf.mxu0
  %v254 = vadd.f32 0.0, %v253
  %v255 = vpop.f32.mrf.mxu0
  %256 = vmatprep.mubr.bf16.mxu0 0
  %257 = vmatmul.mubr.bf16.gmra.mxu0 %v148
  %v258 = vpop.f32.mrf.mxu0
  %v259 = vadd.f32 0.0, %v258
  %v260 = vpop.f32.mrf.mxu0
  %v261 = vpop.f32.mrf.mxu0
  %v262 = vadd.f32 0.0, %v261
  %v263 = vpop.f32.mrf.mxu0
  %264 = vmatprep.mubr.bf16.mxu0 0
  %265 = vmatmul.mubr.bf16.gmra.mxu0 %v151
  %v266 = vpop.f32.mrf.mxu0
  %v267 = vadd.f32 0.0, %v266
  %v268 = vpop.f32.mrf.mxu0
  %v269 = vpop.f32.mrf.mxu0
  %v270 = vadd.f32 0.0, %v269
  %v271 = vpop.f32.mrf.mxu0
  %272 = vmatprep.mubr.bf16.mxu0 0
  %273 = vmatmul.mubr.bf16.gmra.mxu0 %v154
  %v274 = vpop.f32.mrf.mxu0
  %v275 = vadd.f32 0.0, %v274
  %v276 = vpop.f32.mrf.mxu0
  %v277 = vpop.f32.mrf.mxu0
  %v278 = vadd.f32 0.0, %v277
  %v279 = vpop.f32.mrf.mxu0
  %280 = vmatprep.mubr.bf16.mxu0 0
  %281 = vmatmul.mubr.bf16.gmra.mxu0 %v157
  %v282 = vpop.f32.mrf.mxu0
  %v283 = vadd.f32 0.0, %v282
  %v284 = vpop.f32.mrf.mxu0
  %v285 = vpop.f32.mrf.mxu0
  %v286 = vadd.f32 0.0, %v285
  %v287 = vpop.f32.mrf.mxu0
  %288 = vmatprep.mubr.bf16.mxu0 0
  %289 = vmatmul.mubr.bf16.gmra.mxu0 %v160
  %v290 = vpop.f32.mrf.mxu0
  %v291 = vadd.f32 0.0, %v290
  %v292 = vpop.f32.mrf.mxu0
  %v293 = vpop.f32.mrf.mxu0
  %v294 = vadd.f32 0.0, %v293
  %v295 = vpop.f32.mrf.mxu0
  %296 = vmatprep.mubr.bf16.mxu0 0
  %297 = vmatmul.mubr.bf16.gmra.mxu0 %v163
  %v298 = vpop.f32.mrf.mxu0
  %v299 = vadd.f32 0.0, %v298
  %v300 = vpop.f32.mrf.mxu0
  %v301 = vpop.f32.mrf.mxu0
  %v302 = vadd.f32 0.0, %v301
  %v303 = vpop.f32.mrf.mxu0
  %304 = vmatprep.mubr.bf16.mxu0 0
  %305 = vmatmul.mubr.bf16.gmra.mxu0 %v166
  %v306 = vpop.f32.mrf.mxu0
  %v307 = vadd.f32 0.0, %v306
  %v308 = vpop.f32.mrf.mxu0
  %v309 = vpop.f32.mrf.mxu0
  %v310 = vadd.f32 0.0, %v309
  %v311 = vpop.f32.mrf.mxu0
  %312 = vmatprep.mubr.bf16.mxu0 0
  %313 = vmatmul.mubr.bf16.gmra.mxu0 %v169
  %v314 = vpop.f32.mrf.mxu0
  %v315 = vadd.f32 0.0, %v314
  %v316 = vpop.f32.mrf.mxu0
  %v317 = vpop.f32.mrf.mxu0
  %v318 = vadd.f32 0.0, %v317
  %v319 = vpop.f32.mrf.mxu0
  %320 = vmatprep.mubr.bf16.mxu0 0
  %321 = vmatmul.mubr.bf16.gmra.mxu0 %v172
  %v322 = vpop.f32.mrf.mxu0
  %v323 = vadd.f32 0.0, %v322
  %v324 = vpop.f32.mrf.mxu0
  %v325 = vpop.f32.mrf.mxu0
  %v326 = vadd.f32 0.0, %v325
  %v327 = vpop.f32.mrf.mxu0
  %328 = vmatprep.mubr.bf16.mxu0 0
  %329 = vmatmul.mubr.bf16.gmra.mxu0 %v175
  %v330 = vpop.f32.mrf.mxu0
  %v331 = vadd.f32 0.0, %v330
  %v332 = vpop.f32.mrf.mxu0
  %v333 = vpop.f32.mrf.mxu0
  %v334 = vadd.f32 0.0, %v333
  %v335 = vpop.f32.mrf.mxu0
  %336 = vmatprep.mubr.bf16.mxu0 0
  %337 = vmatmul.mubr.bf16.gmra.mxu0 %v178
  %v338 = vpop.f32.mrf.mxu0
  %v339 = vadd.f32 0.0, %v338
  %v340 = vpop.f32.mrf.mxu0
  %v341 = vpop.f32.mrf.mxu0
  %v342 = vadd.f32 0.0, %v341
  %v343 = vpop.f32.mrf.mxu0
  %344 = vdwg.mxu0
  %v345 = vld [vmem:[%s2] sm:$0x1]
  %v347 = vlaneseq
  %v348 = vshrl.u32 %v347, 7
  %v349 = vsub.s32 0, %v348
  %v350 = vrot.slane %v345, %v349
  %v352 = vmul.f32 %v219, %v350
  %v353 = vmul.f32 %v222, %v350
  %v354 = vmul.f32 %v227, %v350
  %v355 = vmul.f32 %v230, %v350
  %v356 = vmul.f32 %v235, %v350
  %v357 = vmul.f32 %v238, %v350
  %v358 = vmul.f32 %v243, %v350
  %v359 = vmul.f32 %v246, %v350
  %v360 = vmul.f32 %v251, %v350
  %v361 = vmul.f32 %v254, %v350
  %v362 = vmul.f32 %v259, %v350
  %v363 = vmul.f32 %v262, %v350
  %v364 = vmul.f32 %v267, %v350
  %v365 = vmul.f32 %v270, %v350
  %v366 = vmul.f32 %v275, %v350
  %v367 = vmul.f32 %v278, %v350
  %v368 = vmul.f32 %v283, %v350
  %v369 = vmul.f32 %v286, %v350
  %v370 = vmul.f32 %v291, %v350
  %v371 = vmul.f32 %v294, %v350
  %v372 = vmul.f32 %v299, %v350
  %v373 = vmul.f32 %v302, %v350
  %v374 = vmul.f32 %v307, %v350
  %v375 = vmul.f32 %v310, %v350
  %v376 = vmul.f32 %v315, %v350
  %v377 = vmul.f32 %v318, %v350
  %v378 = vmul.f32 %v323, %v350
  %v379 = vmul.f32 %v326, %v350
  %v380 = vmul.f32 %v331, %v350
  %v381 = vmul.f32 %v334, %v350
  %v382 = vmul.f32 %v339, %v350
  %v383 = vmul.f32 %v342, %v350
  %v384 = vld [vmem:[%s3] sm:$0x1]
  %v386 = vlaneseq
  %v387 = vshrl.u32 %v386, 7
  %v388 = vsub.s32 0, %v387
  %v389 = vrot.slane %v384, %v388
  %v391 = vadd.f32 %v352, %v389
  %v392 = vadd.f32 %v353, %v389
  %v393 = vadd.f32 %v354, %v389
  %v394 = vadd.f32 %v355, %v389
  %v395 = vadd.f32 %v356, %v389
  %v396 = vadd.f32 %v357, %v389
  %v397 = vadd.f32 %v358, %v389
  %v398 = vadd.f32 %v359, %v389
  %v399 = vadd.f32 %v360, %v389
  %v400 = vadd.f32 %v361, %v389
  %v401 = vadd.f32 %v362, %v389
  %v402 = vadd.f32 %v363, %v389
  %v403 = vadd.f32 %v364, %v389
  %v404 = vadd.f32 %v365, %v389
  %v405 = vadd.f32 %v366, %v389
  %v406 = vadd.f32 %v367, %v389
  %v407 = vadd.f32 %v368, %v389
  %v408 = vadd.f32 %v369, %v389
  %v409 = vadd.f32 %v370, %v389
  %v410 = vadd.f32 %v371, %v389
  %v411 = vadd.f32 %v372, %v389
  %v412 = vadd.f32 %v373, %v389
  %v413 = vadd.f32 %v374, %v389
  %v414 = vadd.f32 %v375, %v389
  %v415 = vadd.f32 %v376, %v389
  %v416 = vadd.f32 %v377, %v389
  %v417 = vadd.f32 %v378, %v389
  %v418 = vadd.f32 %v379, %v389
  %v419 = vadd.f32 %v380, %v389
  %v420 = vadd.f32 %v381, %v389
  %v421 = vadd.f32 %v382, %v389
  %v422 = vadd.f32 %v383, %v389
  %v423 = vpack.c.bf16 %v392, %v391
  %v424 = vpack.c.bf16 %v394, %v393
  %v425 = vpack.c.bf16 %v396, %v395
  %v426 = vpack.c.bf16 %v398, %v397
  %v427 = vpack.c.bf16 %v400, %v399
  %v428 = vpack.c.bf16 %v402, %v401
  %v429 = vpack.c.bf16 %v404, %v403
  %v430 = vpack.c.bf16 %v406, %v405
  %v431 = vpack.c.bf16 %v408, %v407
  %v432 = vpack.c.bf16 %v410, %v409
  %v433 = vpack.c.bf16 %v412, %v411
  %v434 = vpack.c.bf16 %v414, %v413
  %v435 = vpack.c.bf16 %v416, %v415
  %v436 = vpack.c.bf16 %v418, %v417
  %v437 = vpack.c.bf16 %v420, %v419
  %v438 = vpack.c.bf16 %v422, %v421
  %v455 = vunpack.c.l.b16 %v423
  %v456 = vunpack.c.h.b16 %v423
  %v457 = vunpack.c.l.b16 %v424
  %v458 = vunpack.c.h.b16 %v424
  %v459 = vunpack.c.l.b16 %v425
  %v460 = vunpack.c.h.b16 %v425
  %v461 = vunpack.c.l.b16 %v426
  %v462 = vunpack.c.h.b16 %v426
  %v463 = vunpack.c.l.b16 %v427
  %v464 = vunpack.c.h.b16 %v427
  %v465 = vunpack.c.l.b16 %v428
  %v466 = vunpack.c.h.b16 %v428
  %v467 = vunpack.c.l.b16 %v429
  %v468 = vunpack.c.h.b16 %v429
  %v469 = vunpack.c.l.b16 %v430
  %v470 = vunpack.c.h.b16 %v430
  %v471 = vunpack.c.l.b16 %v431
  %v472 = vunpack.c.h.b16 %v431
  %v473 = vunpack.c.l.b16 %v432
  %v474 = vunpack.c.h.b16 %v432
  %v475 = vunpack.c.l.b16 %v433
  %v476 = vunpack.c.h.b16 %v433
  %v477 = vunpack.c.l.b16 %v434
  %v478 = vunpack.c.h.b16 %v434
  %v479 = vunpack.c.l.b16 %v435
  %v480 = vunpack.c.h.b16 %v435
  %v481 = vunpack.c.l.b16 %v436
  %v482 = vunpack.c.h.b16 %v436
  %v483 = vunpack.c.l.b16 %v437
  %v484 = vunpack.c.h.b16 %v437
  %v485 = vunpack.c.l.b16 %v438
  %v486 = vunpack.c.h.b16 %v438
  %v487 = vpack.c.b16 %v455, %v455
  %v488 = vpack.c.b16 %v456, %v456
  %v489 = vpack.c.b16 %v457, %v457
  %v490 = vpack.c.b16 %v458, %v458
  %v491 = vpack.c.b16 %v459, %v459
  %v492 = vpack.c.b16 %v460, %v460
  %v493 = vpack.c.b16 %v461, %v461
  %v494 = vpack.c.b16 %v462, %v462
  %v495 = vpack.c.b16 %v463, %v463
  %v496 = vpack.c.b16 %v464, %v464
  %v497 = vpack.c.b16 %v465, %v465
  %v498 = vpack.c.b16 %v466, %v466
  %v499 = vpack.c.b16 %v467, %v467
  %v500 = vpack.c.b16 %v468, %v468
  %v501 = vpack.c.b16 %v469, %v469
  %v502 = vpack.c.b16 %v470, %v470
  %v503 = vpack.c.b16 %v471, %v471
  %v504 = vpack.c.b16 %v472, %v472
  %v505 = vpack.c.b16 %v473, %v473
  %v506 = vpack.c.b16 %v474, %v474
  %v507 = vpack.c.b16 %v475, %v475
  %v508 = vpack.c.b16 %v476, %v476
  %v509 = vpack.c.b16 %v477, %v477
  %v510 = vpack.c.b16 %v478, %v478
  %v511 = vpack.c.b16 %v479, %v479
  %v512 = vpack.c.b16 %v480, %v480
  %v513 = vpack.c.b16 %v481, %v481
  %v514 = vpack.c.b16 %v482, %v482
  %v515 = vpack.c.b16 %v483, %v483
  %v516 = vpack.c.b16 %v484, %v484
  %v517 = vpack.c.b16 %v485, %v485
  %v518 = vpack.c.b16 %v486, %v486
  %vm551 = vcmask 519168
  %552 = vst.msk [vmem:[%s4] sm:$0xf] %vm551, %v487
  %553 = vst.msk [vmem:[%s4 + $0x4] sm:$0xf] %vm551, %v488
  %554 = vst.msk [vmem:[%s4 + $0x8] sm:$0xf] %vm551, %v489
  %555 = vst.msk [vmem:[%s4 + $0xc] sm:$0xf] %vm551, %v490
  %556 = vst.msk [vmem:[%s4 + $0x10] sm:$0xf] %vm551, %v491
  %557 = vst.msk [vmem:[%s4 + $0x14] sm:$0xf] %vm551, %v492
  %558 = vst.msk [vmem:[%s4 + $0x18] sm:$0xf] %vm551, %v493
  %559 = vst.msk [vmem:[%s4 + $0x1c] sm:$0xf] %vm551, %v494
  %560 = vst.msk [vmem:[%s4 + $0x20] sm:$0xf] %vm551, %v495
  %561 = vst.msk [vmem:[%s4 + $0x24] sm:$0xf] %vm551, %v496
  %562 = vst.msk [vmem:[%s4 + $0x28] sm:$0xf] %vm551, %v497
  %563 = vst.msk [vmem:[%s4 + $0x2c] sm:$0xf] %vm551, %v498
  %564 = vst.msk [vmem:[%s4 + $0x30] sm:$0xf] %vm551, %v499
  %565 = vst.msk [vmem:[%s4 + $0x34] sm:$0xf] %vm551, %v500
  %566 = vst.msk [vmem:[%s4 + $0x38] sm:$0xf] %vm551, %v501
  %567 = vst.msk [vmem:[%s4 + $0x3c] sm:$0xf] %vm551, %v502
  %568 = vst.msk [vmem:[%s4 + $0x40] sm:$0xf] %vm551, %v503
  %569 = vst.msk [vmem:[%s4 + $0x44] sm:$0xf] %vm551, %v504
  %570 = vst.msk [vmem:[%s4 + $0x48] sm:$0xf] %vm551, %v505
  %571 = vst.msk [vmem:[%s4 + $0x4c] sm:$0xf] %vm551, %v506
  %572 = vst.msk [vmem:[%s4 + $0x50] sm:$0xf] %vm551, %v507
  %573 = vst.msk [vmem:[%s4 + $0x54] sm:$0xf] %vm551, %v508
  %574 = vst.msk [vmem:[%s4 + $0x58] sm:$0xf] %vm551, %v509
  %575 = vst.msk [vmem:[%s4 + $0x5c] sm:$0xf] %vm551, %v510
  %576 = vst.msk [vmem:[%s4 + $0x60] sm:$0xf] %vm551, %v511
  %577 = vst.msk [vmem:[%s4 + $0x64] sm:$0xf] %vm551, %v512
  %578 = vst.msk [vmem:[%s4 + $0x68] sm:$0xf] %vm551, %v513
  %579 = vst.msk [vmem:[%s4 + $0x6c] sm:$0xf] %vm551, %v514
  %580 = vst.msk [vmem:[%s4 + $0x70] sm:$0xf] %vm551, %v515
  %581 = vst.msk [vmem:[%s4 + $0x74] sm:$0xf] %vm551, %v516
  %582 = vst.msk [vmem:[%s4 + $0x78] sm:$0xf] %vm551, %v517
  %583 = vst.msk [vmem:[%s4 + $0x7c] sm:$0xf] %vm551, %v518
  // Predicated region
  $region18: #{tpu_custom_call.1} parent=0 // pred_check
    _
  $region19: #{tpu_custom_call.1} parent=0 // pred_check_branch
    %585 = sbr.rel (0) target = $region21
  $region20: #{tpu_custom_call.1} parent=0 // pred_region
    _
  $region21: #{tpu_custom_call.1} parent=0 // pred_fallthru
    _
  // Predicated region
  $region22: #{tpu_custom_call.1} parent=0 // pred_check
    _
  $region23: #{tpu_custom_call.1} parent=0 // pred_check_branch
    %587 = sbr.rel (0) target = $region25
  $region24: #{tpu_custom_call.1} parent=0 // pred_region
    _
  $region25: #{tpu_custom_call.1} parent=0 // pred_fallthru
    _

</llo_original>
